<compile_context>
chip_gen: v7x
topology: tpu7x:2x2x1
jax: 0.10.0
libtpu: 0.0.40
codegen_flags: <defaults>
</compile_context>

<pallas_src>
import jax
import jax.numpy as jnp
from jax.experimental import pallas as pl
from jax.experimental.pallas import tpu as pltpu

# ----------------------------- config ---------------------------------------
N_MODELS = 3
N_CLASSES = 5            # sleep stages
N_SPECTRAL = 16          # enforced by EnsembleModel.forward
HIDDEN = 32
LANE = 128               # TPU lane width
SUBLANE = 16             # safe sublane granularity for bf16 blocks


def _round_up(n, m):
    return ((n + m - 1) // m) * m


# ----------------------------- kernel ---------------------------------------
def ensemble_kernel(x_ref, spec_ref,
                    w1_ref, b1_ref, w2h_ref, w2s_ref, b2_ref, w3_ref, b3_ref,
                    out_ref):
    """All ensemble members packed along the lane dimension; 3+1 matmuls total."""
    x = x_ref[...]          # (TB, CT)   bf16
    spec = spec_ref[...]    # (TB, 16)   bf16

    # Layer 1: packed over members -> (TB, 128), f32 accumulate, f32 bias/ReLU.
    h1 = jnp.dot(x, w1_ref[...], preferred_element_type=jnp.float32) + b1_ref[...]
    h1 = jnp.maximum(h1, 0.0)

    # Layer 2: block-diagonal hidden path + shared spectral path -> (TB, 128).
    h2 = (jnp.dot(h1.astype(w2h_ref.dtype), w2h_ref[...],
                  preferred_element_type=jnp.float32)
          + jnp.dot(spec, w2s_ref[...], preferred_element_type=jnp.float32)
          + b2_ref[...])
    h2 = jnp.maximum(h2, 0.0)

    # Layer 3: ensemble average folded into w3 (rows pre-scaled by 1/n_models).
    out_ref[...] = (jnp.dot(h2.astype(w3_ref.dtype), w3_ref[...],
                            preferred_element_type=jnp.float32)
                    + b3_ref[...])


# ----------------------------- wrapper ---------------------------------------
def pack_params(params, compute_dtype=jnp.bfloat16):
    """Pack per-member weights along the lane dim; fold the 1/n average into W3."""
    w1, b1, w2a, w2b, b2, w3, b3 = params
    n_models, ct, hidden = w1.shape
    n_classes = w3.shape[-1]
    hp = _round_up(n_models * hidden, LANE)   # 96 -> 128
    op = _round_up(n_classes, LANE)           # 5  -> 128

    w1p = jnp.zeros((ct, hp), jnp.float32)
    b1p = jnp.zeros((1, hp), jnp.float32)
    w2hp = jnp.zeros((hp, hp), jnp.float32)
    w2sp = jnp.zeros((N_SPECTRAL, hp), jnp.float32)
    b2p = jnp.zeros((1, hp), jnp.float32)
    w3p = jnp.zeros((hp, op), jnp.float32)
    b3p = jnp.zeros((1, op), jnp.float32)

    for m in range(n_models):
        lo, hi = m * hidden, (m + 1) * hidden
        w1p = w1p.at[:, lo:hi].set(w1[m])
        b1p = b1p.at[:, lo:hi].set(b1[m])
        w2hp = w2hp.at[lo:hi, lo:hi].set(w2a[m])        # block-diagonal
        w2sp = w2sp.at[:, lo:hi].set(w2b[m])
        b2p = b2p.at[:, lo:hi].set(b2[m])
        w3p = w3p.at[lo:hi, :n_classes].set(w3[m] / n_models)
        b3p = b3p.at[:, :n_classes].add(b3[m] / n_models)

    return (w1p.astype(compute_dtype), b1p,
            w2hp.astype(compute_dtype), w2sp.astype(compute_dtype), b2p,
            w3p.astype(compute_dtype), b3p)


def ensemble_forward(x, spectral_features, packed_params, *,
                     batch_tile=256, compute_dtype=jnp.bfloat16):
    """x: (B, C, T) f32, spectral_features: (B, 16) f32 -> (B, N_CLASSES) f32."""
    if spectral_features.shape[1] != N_SPECTRAL:
        raise ValueError(
            f"Expected {N_SPECTRAL} spectral features, got {spectral_features.shape[1]}")

    B, C, T = x.shape
    CT = C * T
    w1p, b1p, w2hp, w2sp, b2p, w3p, b3p = packed_params
    HP = w1p.shape[1]
    OP = w3p.shape[1]

    # Pad batch to sublane granularity and to a whole number of batch tiles.
    Bp = _round_up(max(B, SUBLANE), SUBLANE)
    tb = min(batch_tile, Bp)
    Bp = _round_up(Bp, tb)

    x_flat = jnp.zeros((Bp, CT), compute_dtype).at[:B].set(
        x.reshape(B, CT).astype(compute_dtype))
    spec = jnp.zeros((Bp, N_SPECTRAL), compute_dtype).at[:B].set(
        spectral_features.astype(compute_dtype))

    grid = (Bp // tb,)

    out = pl.pallas_call(
        ensemble_kernel,
        out_shape=jax.ShapeDtypeStruct((Bp, OP), jnp.float32),
        grid_spec=pltpu.PrefetchScalarGridSpec(
            num_scalar_prefetch=0,
            grid=grid,
            in_specs=[
                pl.BlockSpec((tb, CT), lambda i: (i, 0)),            # x tile
                pl.BlockSpec((tb, N_SPECTRAL), lambda i: (i, 0)),    # spectral tile
                pl.BlockSpec((CT, HP), lambda i: (0, 0)),            # W1 packed
                pl.BlockSpec((1, HP), lambda i: (0, 0)),             # b1 packed
                pl.BlockSpec((HP, HP), lambda i: (0, 0)),            # W2 block-diag
                pl.BlockSpec((N_SPECTRAL, HP), lambda i: (0, 0)),    # W2 spectral
                pl.BlockSpec((1, HP), lambda i: (0, 0)),             # b2 packed
                pl.BlockSpec((HP, OP), lambda i: (0, 0)),            # W3 (avg folded)
                pl.BlockSpec((1, OP), lambda i: (0, 0)),             # b3 (avg folded)
            ],
            out_specs=pl.BlockSpec((tb, OP), lambda i: (i, 0)),      # lane-dense out
        ),
        compiler_params=pltpu.CompilerParams(
            dimension_semantics=("parallel",),          # batch tiles are independent
            vmem_limit_bytes=64 * 1024 * 1024,          # v7x-safe explicit budget
        ),
    )(x_flat, spec, w1p, b1p, w2hp, w2sp, b2p, w3p, b3p)

    return out[:B, :N_CLASSES]


def init_params(key, in_features, n_models=N_MODELS,
                hidden=HIDDEN, n_spectral=N_SPECTRAL, n_classes=N_CLASSES):
    """Deterministic kaiming-normal-style weights, zero biases (per _init_weights)."""
    ks = jax.random.split(key, 4)

    def kaiming(k, shape, fan_out):
        std = (2.0 / fan_out) ** 0.5
        return std * jax.random.normal(k, shape, dtype=jnp.float32)

    w1 = kaiming(ks[0], (n_models, in_features, hidden), hidden)
    w2a = kaiming(ks[1], (n_models, hidden, hidden), hidden)
    w2b = kaiming(ks[2], (n_models, n_spectral, hidden), hidden)
    w3 = kaiming(ks[3], (n_models, hidden, n_classes), n_classes)
    b1 = jnp.zeros((n_models, 1, hidden), jnp.float32)
    b2 = jnp.zeros((n_models, 1, hidden), jnp.float32)
    b3 = jnp.zeros((n_models, 1, n_classes), jnp.float32)
    return (w1, b1, w2a, w2b, b2, w3, b3)


# pure-JAX reference (same bf16 matmul inputs / f32 accumulation as the kernel)
def ensemble_reference(x, spec, params, compute_dtype=jnp.bfloat16):
    w1, b1, w2a, w2b, b2, w3, b3 = params
    B = x.shape[0]
    cd = compute_dtype
    xf = x.reshape(B, -1).astype(cd)
    sp = spec.astype(cd)
    outs = []
    for m in range(w1.shape[0]):
        h1 = jnp.maximum(
            jnp.dot(xf, w1[m].astype(cd), preferred_element_type=jnp.float32) + b1[m], 0.0)
        h2 = jnp.maximum(
            jnp.dot(h1.astype(cd), w2a[m].astype(cd), preferred_element_type=jnp.float32)
            + jnp.dot(sp, w2b[m].astype(cd), preferred_element_type=jnp.float32)
            + b2[m], 0.0)
        outs.append(
            jnp.dot(h2.astype(cd), w3[m].astype(cd), preferred_element_type=jnp.float32)
            + b3[m])
    return jnp.mean(jnp.stack(outs), axis=0)


if __name__ == "__main__":
    key = jax.random.PRNGKey(0)
    kx, ks, kp = jax.random.split(key, 3)

    B, C, T = 2, 4, 16
    x = jax.random.normal(kx, (B, C, T), dtype=jnp.float32)
    spectral_features = jax.random.normal(ks, (B, N_SPECTRAL), dtype=jnp.float32)
    params = init_params(kp, in_features=C * T)
    packed = pack_params(params)

    out = ensemble_forward(x, spectral_features, packed)
    out = jax.block_until_ready(out)

    ref = ensemble_reference(x, spectral_features, params)
    assert out.shape == (B, N_CLASSES)
    assert jnp.allclose(out, ref, atol=5e-2, rtol=5e-2), (out, ref)

    print("KERNEL_OK")
</pallas_src>

<mosaic_0001>
module attributes {stable_mosaic.version = 11 : i64} {
  func.func @ensemble_kernel(%arg0: i32, %arg1: memref<16x64xbf16, #tpu.memory_space<vmem>>, %arg2: memref<16x16xbf16, #tpu.memory_space<vmem>>, %arg3: memref<64x128xbf16, #tpu.memory_space<vmem>>, %arg4: memref<1x128xf32, #tpu.memory_space<vmem>>, %arg5: memref<128x128xbf16, #tpu.memory_space<vmem>>, %arg6: memref<16x128xbf16, #tpu.memory_space<vmem>>, %arg7: memref<1x128xf32, #tpu.memory_space<vmem>>, %arg8: memref<128x128xbf16, #tpu.memory_space<vmem>>, %arg9: memref<1x128xf32, #tpu.memory_space<vmem>>, %arg10: memref<16x128xf32, #tpu.memory_space<vmem>>) attributes {dimension_semantics = [#tpu.dimension_semantics<parallel>], iteration_bounds = array<i64: 1>, scalar_prefetch = 0 : i64, scratch_operands = 0 : i64, tpu.core_type = #tpu.core_type<tc>, window_params = [{transform_indices = @transform_0, window_bounds = array<i64: 16, 64>}, {transform_indices = @transform_1, window_bounds = array<i64: 16, 16>}, {pipeline_mode = #tpu.pipeline_mode<synchronous>, transform_indices = @transform_2, window_bounds = array<i64: 64, 128>}, {pipeline_mode = #tpu.pipeline_mode<synchronous>, transform_indices = @transform_3, window_bounds = array<i64: 1, 128>}, {pipeline_mode = #tpu.pipeline_mode<synchronous>, transform_indices = @transform_4, window_bounds = array<i64: 128, 128>}, {pipeline_mode = #tpu.pipeline_mode<synchronous>, transform_indices = @transform_5, window_bounds = array<i64: 16, 128>}, {pipeline_mode = #tpu.pipeline_mode<synchronous>, transform_indices = @transform_6, window_bounds = array<i64: 1, 128>}, {pipeline_mode = #tpu.pipeline_mode<synchronous>, transform_indices = @transform_7, window_bounds = array<i64: 128, 128>}, {pipeline_mode = #tpu.pipeline_mode<synchronous>, transform_indices = @transform_8, window_bounds = array<i64: 1, 128>}, {transform_indices = @transform_9, window_bounds = array<i64: 16, 128>}]} {
    %c0 = arith.constant 0 : index
    %c0_0 = arith.constant 0 : index
    %0 = vector.load %arg1[%c0, %c0_0] : memref<16x64xbf16, #tpu.memory_space<vmem>>, vector<16x64xbf16>
    %c0_1 = arith.constant 0 : index
    %c0_2 = arith.constant 0 : index
    %1 = vector.load %arg2[%c0_1, %c0_2] : memref<16x16xbf16, #tpu.memory_space<vmem>>, vector<16x16xbf16>
    %c0_3 = arith.constant 0 : index
    %c0_4 = arith.constant 0 : index
    %2 = vector.load %arg3[%c0_3, %c0_4] : memref<64x128xbf16, #tpu.memory_space<vmem>>, vector<64x128xbf16>
    %cst = arith.constant dense<0.000000e+00> : vector<16x128xf32>
    %3 = tpu.matmul %0, %2, %cst {dimension_numbers = #tpu.dot_dimension_numbers<[1], [0], [0], [1], [0, 0, 1, 1], [], []>} : vector<16x64xbf16>, vector<64x128xbf16>, vector<16x128xf32> -> vector<16x128xf32>
    %c0_5 = arith.constant 0 : index
    %c0_6 = arith.constant 0 : index
    %4 = vector.load %arg4[%c0_5, %c0_6] : memref<1x128xf32, #tpu.memory_space<vmem>>, vector<1x128xf32>
    %5 = vector.broadcast %4 : vector<1x128xf32> to vector<16x128xf32>
    %6 = arith.addf %3, %5 : vector<16x128xf32>
    %cst_7 = arith.constant 0.000000e+00 : f32
    %7 = vector.broadcast %cst_7 : f32 to vector<16x128xf32>
    %8 = arith.maximumf %6, %7 : vector<16x128xf32>
    %9 = arith.truncf %8 : vector<16x128xf32> to vector<16x128xbf16>
    %c0_8 = arith.constant 0 : index
    %c0_9 = arith.constant 0 : index
    %10 = vector.load %arg5[%c0_8, %c0_9] : memref<128x128xbf16, #tpu.memory_space<vmem>>, vector<128x128xbf16>
    %cst_10 = arith.constant dense<0.000000e+00> : vector<16x128xf32>
    %11 = tpu.matmul %9, %10, %cst_10 {dimension_numbers = #tpu.dot_dimension_numbers<[1], [0], [0], [1], [0, 0, 1, 1], [], []>} : vector<16x128xbf16>, vector<128x128xbf16>, vector<16x128xf32> -> vector<16x128xf32>
    %c0_11 = arith.constant 0 : index
    %c0_12 = arith.constant 0 : index
    %12 = vector.load %arg6[%c0_11, %c0_12] : memref<16x128xbf16, #tpu.memory_space<vmem>>, vector<16x128xbf16>
    %cst_13 = arith.constant dense<0.000000e+00> : vector<16x128xf32>
    %13 = tpu.matmul %1, %12, %cst_13 {dimension_numbers = #tpu.dot_dimension_numbers<[1], [0], [0], [1], [0, 0, 1, 1], [], []>} : vector<16x16xbf16>, vector<16x128xbf16>, vector<16x128xf32> -> vector<16x128xf32>
    %14 = arith.addf %11, %13 : vector<16x128xf32>
    %c0_14 = arith.constant 0 : index
    %c0_15 = arith.constant 0 : index
    %15 = vector.load %arg7[%c0_14, %c0_15] : memref<1x128xf32, #tpu.memory_space<vmem>>, vector<1x128xf32>
    %16 = vector.broadcast %15 : vector<1x128xf32> to vector<16x128xf32>
    %17 = arith.addf %14, %16 : vector<16x128xf32>
    %cst_16 = arith.constant 0.000000e+00 : f32
    %18 = vector.broadcast %cst_16 : f32 to vector<16x128xf32>
    %19 = arith.maximumf %17, %18 : vector<16x128xf32>
    %20 = arith.truncf %19 : vector<16x128xf32> to vector<16x128xbf16>
    %c0_17 = arith.constant 0 : index
    %c0_18 = arith.constant 0 : index
    %21 = vector.load %arg8[%c0_17, %c0_18] : memref<128x128xbf16, #tpu.memory_space<vmem>>, vector<128x128xbf16>
    %cst_19 = arith.constant dense<0.000000e+00> : vector<16x128xf32>
    %22 = tpu.matmul %20, %21, %cst_19 {dimension_numbers = #tpu.dot_dimension_numbers<[1], [0], [0], [1], [0, 0, 1, 1], [], []>} : vector<16x128xbf16>, vector<128x128xbf16>, vector<16x128xf32> -> vector<16x128xf32>
    %c0_20 = arith.constant 0 : index
    %c0_21 = arith.constant 0 : index
    %23 = vector.load %arg9[%c0_20, %c0_21] : memref<1x128xf32, #tpu.memory_space<vmem>>, vector<1x128xf32>
    %24 = vector.broadcast %23 : vector<1x128xf32> to vector<16x128xf32>
    %25 = arith.addf %22, %24 : vector<16x128xf32>
    %c0_22 = arith.constant 0 : index
    %c0_23 = arith.constant 0 : index
    %26 = vector.load %arg10[%c0_22, %c0_23] : memref<16x128xf32, #tpu.memory_space<vmem>>, vector<16x128xf32>
    tpu.vector_store %arg10[%c0_22, %c0_23], %25 {strides = array<i32>} : memref<16x128xf32, #tpu.memory_space<vmem>>, vector<16x128xf32>,
    return
  }
  func.func @transform_0(%arg0: i32) -> (i32, i32) {
    %c0_i32 = arith.constant 0 : i32
    %c0_i32_0 = arith.constant 0 : i32
    return %arg0, %c0_i32 : i32, i32
  }
  func.func @transform_1(%arg0: i32) -> (i32, i32) {
    %c0_i32 = arith.constant 0 : i32
    %c0_i32_0 = arith.constant 0 : i32
    return %arg0, %c0_i32 : i32, i32
  }
  func.func @transform_2(%arg0: i32) -> (i32, i32) {
    %c0_i32 = arith.constant 0 : i32
    %c0_i32_0 = arith.constant 0 : i32
    %c0_i32_1 = arith.constant 0 : i32
    return %c0_i32, %c0_i32_0 : i32, i32
  }
  func.func @transform_3(%arg0: i32) -> (i32, i32) {
    %c0_i32 = arith.constant 0 : i32
    %c0_i32_0 = arith.constant 0 : i32
    %c0_i32_1 = arith.constant 0 : i32
    return %c0_i32, %c0_i32_0 : i32, i32
  }
  func.func @transform_4(%arg0: i32) -> (i32, i32) {
    %c0_i32 = arith.constant 0 : i32
    %c0_i32_0 = arith.constant 0 : i32
    %c0_i32_1 = arith.constant 0 : i32
    return %c0_i32, %c0_i32_0 : i32, i32
  }
  func.func @transform_5(%arg0: i32) -> (i32, i32) {
    %c0_i32 = arith.constant 0 : i32
    %c0_i32_0 = arith.constant 0 : i32
    %c0_i32_1 = arith.constant 0 : i32
    return %c0_i32, %c0_i32_0 : i32, i32
  }
  func.func @transform_6(%arg0: i32) -> (i32, i32) {
    %c0_i32 = arith.constant 0 : i32
    %c0_i32_0 = arith.constant 0 : i32
    %c0_i32_1 = arith.constant 0 : i32
    return %c0_i32, %c0_i32_0 : i32, i32
  }
  func.func @transform_7(%arg0: i32) -> (i32, i32) {
    %c0_i32 = arith.constant 0 : i32
    %c0_i32_0 = arith.constant 0 : i32
    %c0_i32_1 = arith.constant 0 : i32
    return %c0_i32, %c0_i32_0 : i32, i32
  }
  func.func @transform_8(%arg0: i32) -> (i32, i32) {
    %c0_i32 = arith.constant 0 : i32
    %c0_i32_0 = arith.constant 0 : i32
    %c0_i32_1 = arith.constant 0 : i32
    return %c0_i32, %c0_i32_0 : i32, i32
  }
  func.func @transform_9(%arg0: i32) -> (i32, i32) {
    %c0_i32 = arith.constant 0 : i32
    %c0_i32_0 = arith.constant 0 : i32
    return %arg0, %c0_i32 : i32, i32
  }
}

</mosaic_0001>

<llo_original>
// kernel: tpu_custom_call.1
$region0: #{tpu_custom_call.1}
  #allocation0 [shape = 'u32[]', space=smem, size = 0x4, offset = 0x4, fixed_abs, tag = 'smem constant byte address 0x4 - core index']
  #allocation1 [shape = 'u32[144,128]{1,0:T(1,128)}', space=vmem, size = 0x12000, scoped, tag = 'internal scratch']
  %s0 = inlined_call_operand.hbm [shape: bf16[16,64], index: 0, kind: input, shape index: {}]
  %s1 = inlined_call_operand.hbm [shape: bf16[16,16], index: 1, kind: input, shape index: {}]
  %s2 = inlined_call_operand.hbm [shape: bf16[64,128], index: 2, kind: input, shape index: {}]
  %s3 = inlined_call_operand.hbm [shape: f32[1,128], index: 3, kind: input, shape index: {}]
  %s4 = inlined_call_operand.hbm [shape: bf16[128,128], index: 4, kind: input, shape index: {}]
  %s5 = inlined_call_operand.hbm [shape: bf16[16,128], index: 5, kind: input, shape index: {}]
  %s6 = inlined_call_operand.hbm [shape: f32[1,128], index: 6, kind: input, shape index: {}]
  %s7 = inlined_call_operand.hbm [shape: bf16[128,128], index: 7, kind: input, shape index: {}]
  %s8 = inlined_call_operand.hbm [shape: f32[1,128], index: 8, kind: input, shape index: {}]
  %s9 = inlined_call_operand.hbm [shape: f32[16,128], index: 9, kind: output, shape index: {}]
  %s10 = sld [smem:[#allocation0]]
  $region82: #{tpu_custom_call.1} parent=0
    _
  %s12 = ssub.s32 1, %s10
  %s13 = scalar_select 0, %s12, %s10
  $region1: #{tpu_custom_call.1} parent=0
    #allocation2 [shape = 'u8[4096]{0}', space=vmem, size = 0x1000, scoped, tag = 'input window, operand 0, single buffered']
    #allocation3 [shape = 's32[1]{0}', space=sflag, size = 0x4, scoped, tag = 'scoped memory for tpu_custom_call.1']
    #allocation4 [shape = 's32[1]{0}', space=sflag, size = 0x4, scoped, tag = 'scoped memory for tpu_custom_call.1']
    #allocation5 [shape = 'u8[4096]{0}', space=vmem, size = 0x1000, scoped, tag = 'input window, operand 1, single buffered']
    #allocation6 [shape = 's32[1]{0}', space=sflag, size = 0x4, scoped, tag = 'scoped memory for tpu_custom_call.1']
    #allocation7 [shape = 'u8[16384]{0}', space=vmem, size = 0x4000, scoped, tag = 'input window, operand 2, single buffered']
    #allocation8 [shape = 'u8[512]{0}', space=vmem, size = 0x400, scoped, tag = 'input window, operand 3, single buffered']
    #allocation9 [shape = 's32[1]{0}', space=sflag, size = 0x4, scoped, tag = 'scoped memory for tpu_custom_call.1']
    #allocation10 [shape = 'u8[32768]{0}', space=vmem, size = 0x8000, scoped, tag = 'input window, operand 4, single buffered']
    #allocation11 [shape = 'u8[4096]{0}', space=vmem, size = 0x1000, scoped, tag = 'input window, operand 5, single buffered']
    #allocation12 [shape = 's32[1]{0}', space=sflag, size = 0x4, scoped, tag = 'scoped memory for tpu_custom_call.1']
    #allocation13 [shape = 'u8[512]{0}', space=vmem, size = 0x400, scoped, tag = 'input window, operand 6, single buffered']
    #allocation14 [shape = 'u8[32768]{0}', space=vmem, size = 0x8000, scoped, tag = 'input window, operand 7, single buffered']
    #allocation15 [shape = 's32[1]{0}', space=sflag, size = 0x4, scoped, tag = 'scoped memory for tpu_custom_call.1']
    #allocation16 [shape = 'u8[512]{0}', space=vmem, size = 0x400, scoped, tag = 'input window, operand 8, single buffered']
    #allocation17 [shape = 'u8[8192]{0}', space=vmem, size = 0x2000, scoped, tag = 'output window, operand 0, single buffered']
    %14 = vsyncpa [#allocation3], 0
    %15 = vsyncpa [#allocation6], 0
    %16 = vsyncpa [#allocation9], 0
    %17 = vsyncpa [#allocation12], 0
    %18 = vsyncpa [#allocation15], 0
    %19 = vsyncpa [#allocation4], 0
    // Predicated region
    $region2: #{tpu_custom_call.1} parent=1 // pred_check
      _
    $region3: #{tpu_custom_call.1} parent=1 // pred_check_branch
      %21 = sbr.rel (0) target = $region5
    $region4: #{tpu_custom_call.1} parent=1 // pred_region
      %s23 = ssub.s32 128, 128
      %24 = vsyncadd [#allocation3], %s23
      %s25 = sshll.u32 [#allocation2], 4
      %s26 = int_to_ptr.vmem [resolvable:$true] %s25
      %31 = dma.hbm_to_vmem [thread:$0]  %s0, 128, %s26, [#allocation3], 64, 64, 4
    $region5: #{tpu_custom_call.1} parent=1 // pred_fallthru
      _
    // Predicated region
    $region6: #{tpu_custom_call.1} parent=1 // pred_check
      _
    $region7: #{tpu_custom_call.1} parent=1 // pred_check_branch
      %33 = sbr.rel (0) target = $region9
    $region8: #{tpu_custom_call.1} parent=1 // pred_region
      %s35 = ssub.s32 128, 128
      %36 = vsyncadd [#allocation6], %s35
      %s37 = sshll.u32 [#allocation5], 4
      %s38 = int_to_ptr.vmem [resolvable:$true] %s37
      %43 = dma.hbm_to_vmem [thread:$0]  %s1, 128, %s38, [#allocation6], 64, 64, 4
    $region9: #{tpu_custom_call.1} parent=1 // pred_fallthru
      _
    // Predicated region
    $region10: #{tpu_custom_call.1} parent=1 // pred_check
      _
    $region11: #{tpu_custom_call.1} parent=1 // pred_check_branch
      %45 = sbr.rel (0) target = $region13
    $region12: #{tpu_custom_call.1} parent=1 // pred_region
      %s47 = ssub.s32 512, 512
      %48 = vsyncadd [#allocation6], %s47
      %s49 = sshll.u32 [#allocation7], 4
      %s50 = int_to_ptr.vmem [resolvable:$true] %s49
      %55 = dma.hbm_to_vmem [thread:$0]  %s2, 512, %s50, [#allocation6], 64, 64, 4
    $region13: #{tpu_custom_call.1} parent=1 // pred_fallthru
      _
    // Predicated region
    $region14: #{tpu_custom_call.1} parent=1 // pred_check
      _
    $region15: #{tpu_custom_call.1} parent=1 // pred_check_branch
      %57 = sbr.rel (0) target = $region17
    $region16: #{tpu_custom_call.1} parent=1 // pred_region
      %s59 = ssub.s32 16, 16
      %60 = vsyncadd [#allocation9], %s59
      %s62 = sshll.u32 [#allocation8], 4
      %s63 = int_to_ptr.vmem [resolvable:$true] %s62
      %65 = dma.hbm_to_vmem [thread:$0]  %s3, 16, %s63, [#allocation9]
    $region17: #{tpu_custom_call.1} parent=1 // pred_fallthru
      _
    // Predicated region
    $region18: #{tpu_custom_call.1} parent=1 // pred_check
      _
    $region19: #{tpu_custom_call.1} parent=1 // pred_check_branch
      %67 = sbr.rel (0) target = $region21
    $region20: #{tpu_custom_call.1} parent=1 // pred_region
      %s69 = ssub.s32 1024, 1024
      %70 = vsyncadd [#allocation9], %s69
      %s71 = sshll.u32 [#allocation10], 4
      %s72 = int_to_ptr.vmem [resolvable:$true] %s71
      %77 = dma.hbm_to_vmem [thread:$0]  %s4, 1024, %s72, [#allocation9], 64, 64, 4
    $region21: #{tpu_custom_call.1} parent=1 // pred_fallthru
      _
    // Predicated region
    $region22: #{tpu_custom_call.1} parent=1 // pred_check
      _
    $region23: #{tpu_custom_call.1} parent=1 // pred_check_branch
      %79 = sbr.rel (0) target = $region25
    $region24: #{tpu_custom_call.1} parent=1 // pred_region
      %s81 = ssub.s32 128, 128
      %82 = vsyncadd [#allocation12], %s81
      %s83 = sshll.u32 [#allocation11], 4
      %s84 = int_to_ptr.vmem [resolvable:$true] %s83
      %89 = dma.hbm_to_vmem [thread:$0]  %s5, 128, %s84, [#allocation12], 64, 64, 4
    $region25: #{tpu_custom_call.1} parent=1 // pred_fallthru
      _
    // Predicated region
    $region26: #{tpu_custom_call.1} parent=1 // pred_check
      _
    $region27: #{tpu_custom_call.1} parent=1 // pred_check_branch
      %91 = sbr.rel (0) target = $region29
    $region28: #{tpu_custom_call.1} parent=1 // pred_region
      %s93 = ssub.s32 16, 16
      %94 = vsyncadd [#allocation12], %s93
      %s96 = sshll.u32 [#allocation13], 4
      %s97 = int_to_ptr.vmem [resolvable:$true] %s96
      %99 = dma.hbm_to_vmem [thread:$0]  %s6, 16, %s97, [#allocation12]
    $region29: #{tpu_custom_call.1} parent=1 // pred_fallthru
      _
    // Predicated region
    $region30: #{tpu_custom_call.1} parent=1 // pred_check
      _
    $region31: #{tpu_custom_call.1} parent=1 // pred_check_branch
      %101 = sbr.rel (0) target = $region33
    $region32: #{tpu_custom_call.1} parent=1 // pred_region
      %s103 = ssub.s32 1024, 1024
      %104 = vsyncadd [#allocation15], %s103
      %s105 = sshll.u32 [#allocation14], 4
      %s106 = int_to_ptr.vmem [resolvable:$true] %s105
      %111 = dma.hbm_to_vmem [thread:$0]  %s7, 1024, %s106, [#allocation15], 64, 64, 4
    $region33: #{tpu_custom_call.1} parent=1 // pred_fallthru
      _
    // Predicated region
    $region34: #{tpu_custom_call.1} parent=1 // pred_check
      _
    $region35: #{tpu_custom_call.1} parent=1 // pred_check_branch
      %113 = sbr.rel (0) target = $region37
    $region36: #{tpu_custom_call.1} parent=1 // pred_region
      %s115 = ssub.s32 16, 16
      %116 = vsyncadd [#allocation15], %s115
      %s118 = sshll.u32 [#allocation16], 4
      %s119 = int_to_ptr.vmem [resolvable:$true] %s118
      %121 = dma.hbm_to_vmem [thread:$0]  %s8, 16, %s119, [#allocation15]
    $region37: #{tpu_custom_call.1} parent=1 // pred_fallthru
      _
    // Predicated region
    $region38: #{tpu_custom_call.1} parent=1 // pred_check
      _
    $region39: #{tpu_custom_call.1} parent=1 // pred_check_branch
      %123 = sbr.rel (0) target = $region41
    $region40: #{tpu_custom_call.1} parent=1 // pred_region
      %124 = dma.done [#allocation3], 128
    $region41: #{tpu_custom_call.1} parent=1 // pred_fallthru
      _
    // Predicated region
    $region42: #{tpu_custom_call.1} parent=1 // pred_check
      _
    $region43: #{tpu_custom_call.1} parent=1 // pred_check_branch
      %126 = sbr.rel (0) target = $region45
    $region44: #{tpu_custom_call.1} parent=1 // pred_region
      %127 = dma.done [#allocation6], 128
    $region45: #{tpu_custom_call.1} parent=1 // pred_fallthru
      _
    // Predicated region
    $region46: #{tpu_custom_call.1} parent=1 // pred_check
      _
    $region47: #{tpu_custom_call.1} parent=1 // pred_check_branch
      %129 = sbr.rel (0) target = $region49
    $region48: #{tpu_custom_call.1} parent=1 // pred_region
      %130 = dma.done [#allocation6], 512
    $region49: #{tpu_custom_call.1} parent=1 // pred_fallthru
      _
    // Predicated region
    $region50: #{tpu_custom_call.1} parent=1 // pred_check
      _
    $region51: #{tpu_custom_call.1} parent=1 // pred_check_branch
      %132 = sbr.rel (0) target = $region53
    $region52: #{tpu_custom_call.1} parent=1 // pred_region
      %133 = dma.done [#allocation9], 16
    $region53: #{tpu_custom_call.1} parent=1 // pred_fallthru
      _
    // Predicated region
    $region54: #{tpu_custom_call.1} parent=1 // pred_check
      _
    $region55: #{tpu_custom_call.1} parent=1 // pred_check_branch
      %135 = sbr.rel (0) target = $region57
    $region56: #{tpu_custom_call.1} parent=1 // pred_region
      %136 = dma.done [#allocation9], 1024
    $region57: #{tpu_custom_call.1} parent=1 // pred_fallthru
      _
    // Predicated region
    $region58: #{tpu_custom_call.1} parent=1 // pred_check
      _
    $region59: #{tpu_custom_call.1} parent=1 // pred_check_branch
      %138 = sbr.rel (0) target = $region61
    $region60: #{tpu_custom_call.1} parent=1 // pred_region
      %139 = dma.done [#allocation12], 128
    $region61: #{tpu_custom_call.1} parent=1 // pred_fallthru
      _
    // Predicated region
    $region62: #{tpu_custom_call.1} parent=1 // pred_check
      _
    $region63: #{tpu_custom_call.1} parent=1 // pred_check_branch
      %141 = sbr.rel (0) target = $region65
    $region64: #{tpu_custom_call.1} parent=1 // pred_region
      %142 = dma.done [#allocation12], 16
    $region65: #{tpu_custom_call.1} parent=1 // pred_fallthru
      _
    // Predicated region
    $region66: #{tpu_custom_call.1} parent=1 // pred_check
      _
    $region67: #{tpu_custom_call.1} parent=1 // pred_check_branch
      %144 = sbr.rel (0) target = $region69
    $region68: #{tpu_custom_call.1} parent=1 // pred_region
      %145 = dma.done [#allocation15], 1024
    $region69: #{tpu_custom_call.1} parent=1 // pred_fallthru
      _
    // Predicated region
    $region70: #{tpu_custom_call.1} parent=1 // pred_check
      _
    $region71: #{tpu_custom_call.1} parent=1 // pred_check_branch
      %147 = sbr.rel (0) target = $region73
    $region72: #{tpu_custom_call.1} parent=1 // pred_region
      %148 = dma.done [#allocation15], 16
    $region73: #{tpu_custom_call.1} parent=1 // pred_fallthru
      _
    %v150 = vld [vmem:[#allocation2] sm:$0xf]
    %v151 = vld [vmem:[#allocation2 + $0x4] sm:$0xf]
    %v152 = vld [vmem:[#allocation5] sm:$0xf]
    %v153 = vld [vmem:[#allocation5 + $0x4] sm:$0xf]
    %v154 = vld [vmem:[#allocation7] sm:$0xf]
    %v155 = vld [vmem:[#allocation7 + $0x4] sm:$0xf]
    %v156 = vld [vmem:[#allocation7 + $0x8] sm:$0xf]
    %v157 = vld [vmem:[#allocation7 + $0xc] sm:$0xf]
    %v158 = vld [vmem:[#allocation7 + $0x10] sm:$0xf]
    %v159 = vld [vmem:[#allocation7 + $0x14] sm:$0xf]
    %v160 = vld [vmem:[#allocation7 + $0x18] sm:$0xf]
    %v161 = vld [vmem:[#allocation7 + $0x1c] sm:$0xf]
    %v162 = vld [vmem:[#allocation8] sm:$0x1]
    %v164 = vlaneseq
    %v165 = vshrl.u32 %v164, 7
    %v166 = vsub.s32 0, %v165
    %v167 = vrot.slane %v162, %v166
    %v171 = vunpack.c.l.b16 %v150
    %v172 = vunpack.c.l.b16 %v151
    %v173 = vpack.c.b16 %v172, %v171
    %v182 = vunpack.c.l.b16 %v154
    %v183 = vunpack.c.l.b16 %v155
    %v184 = vunpack.c.l.b16 %v156
    %v185 = vunpack.c.l.b16 %v157
    %v186 = vunpack.c.l.b16 %v158
    %v187 = vunpack.c.l.b16 %v159
    %v188 = vunpack.c.l.b16 %v160
    %v189 = vunpack.c.l.b16 %v161
    %v190 = vpack.c.b16 %v183, %v182
    %v191 = vpack.c.b16 %v185, %v184
    %v192 = vpack.c.b16 %v187, %v186
    %v193 = vpack.c.b16 %v189, %v188
    %vm198 = vcmask 523264
    %v200 = vsel %vm198, %v173, 0
    %202 = vmatprep.subr.bf16.mxu0 0
    %203 = vmatpush1.bf16.msra.mxu0 %v190
    %204 = vmatprep.subr.bf16.mxu0 0
    %205 = vmatpush1.bf16.msra.mxu0 %v191
    %206 = vmatprep.subr.bf16.mxu0 0
    %207 = vmatpush1.bf16.msra.mxu0 %v192
    %208 = vmatprep.subr.bf16.mxu0 0
    %209 = vmatpush1.bf16.msra.mxu0 %v193
    %210 = vmatprep.subr.bf16.mxu0 0
    %211 = vmatpush1.bf16.msra.mxu0 0
    %212 = vmatprep.subr.bf16.mxu0 0
    %213 = vmatpush1.bf16.msra.mxu0 0
    %214 = vmatprep.subr.bf16.mxu0 0
    %215 = vmatpush1.bf16.msra.mxu0 0
    %216 = vmatprep.subr.bf16.mxu0 0
    %217 = vmatpush1.bf16.msra.mxu0 0
    %218 = vmatprep.subr.bf16.mxu0 0
    %219 = vmatpush1.bf16.msra.mxu0 0
    %220 = vmatprep.subr.bf16.mxu0 0
    %221 = vmatpush1.bf16.msra.mxu0 0
    %222 = vmatprep.subr.bf16.mxu0 0
    %223 = vmatpush1.bf16.msra.mxu0 0
    %224 = vmatprep.subr.bf16.mxu0 0
    %225 = vmatpush1.bf16.msra.mxu0 0
    %226 = vmatprep.subr.bf16.mxu0 0
    %227 = vmatpush1.bf16.msra.mxu0 0
    %228 = vmatprep.subr.bf16.mxu0 0
    %229 = vmatpush1.bf16.msra.mxu0 0
    %230 = vmatprep.subr.bf16.mxu0 0
    %231 = vmatpush1.bf16.msra.mxu0 0
    %232 = vmatprep.subr.bf16.mxu0 0
    %233 = vmatpush1.bf16.msra.mxu0 0
    %234 = vmatprep.mubr.bf16.mxu0 0
    %235 = vmatmul.mubr.bf16.gmra.mrb[0].mxu0 %v200
    %v236 = vpop.f32.mrb[0].mxu0
    %v237 = vadd.f32 %v167, %v236
    %v238 = vpop.f32.mrb[0].mxu0
    %v239 = vpop.f32.mrb[0].mxu0
    %v240 = vadd.f32 %v167, %v239
    %v241 = vpop.f32.mrb[0].mxu0
    %242 = vdwg.mxu0
    %v243 = vmax.f32 %v237, 0.0
    %v244 = vmax.f32 %v240, 0.0
    %v245 = vpack.c.bf16 %v244, %v243
    %v246 = vld [vmem:[#allocation10] sm:$0xf]
    %v247 = vld [vmem:[#allocation10 + $0x4] sm:$0xf]
    %v248 = vld [vmem:[#allocation10 + $0x8] sm:$0xf]
    %v249 = vld [vmem:[#allocation10 + $0xc] sm:$0xf]
    %v250 = vld [vmem:[#allocation10 + $0x10] sm:$0xf]
    %v251 = vld [vmem:[#allocation10 + $0x14] sm:$0xf]
    %v252 = vld [vmem:[#allocation10 + $0x18] sm:$0xf]
    %v253 = vld [vmem:[#allocation10 + $0x1c] sm:$0xf]
    %v254 = vld [vmem:[#allocation10 + $0x20] sm:$0xf]
    %v255 = vld [vmem:[#allocation10 + $0x24] sm:$0xf]
    %v256 = vld [vmem:[#allocation10 + $0x28] sm:$0xf]
    %v257 = vld [vmem:[#allocation10 + $0x2c] sm:$0xf]
    %v258 = vld [vmem:[#allocation10 + $0x30] sm:$0xf]
    %v259 = vld [vmem:[#allocation10 + $0x34] sm:$0xf]
    %v260 = vld [vmem:[#allocation10 + $0x38] sm:$0xf]
    %v261 = vld [vmem:[#allocation10 + $0x3c] sm:$0xf]
    %v262 = vld [vmem:[#allocation11] sm:$0xf]
    %v263 = vld [vmem:[#allocation11 + $0x4] sm:$0xf]
    %v266 = vunpack.c.l.b16 %v152
    %v267 = vunpack.c.l.b16 %v153
    %v268 = vpack.c.b16 %v267, %v266
    %v271 = vunpack.c.l.b16 %v262
    %v272 = vunpack.c.l.b16 %v263
    %v273 = vpack.c.b16 %v272, %v271
    %vm275 = vcmask 130048
    %v277 = vsel %vm275, %v268, 0
    %279 = vmatprep.subr.bf16.mxu0 0
    %280 = vmatpush1.bf16.msra.mxu0 %v273
    %281 = vmatprep.subr.bf16.mxu0 0
    %282 = vmatpush1.bf16.msra.mxu0 0
    %283 = vmatprep.subr.bf16.mxu0 0
    %284 = vmatpush1.bf16.msra.mxu0 0
    %285 = vmatprep.subr.bf16.mxu0 0
    %286 = vmatpush1.bf16.msra.mxu0 0
    %287 = vmatprep.subr.bf16.mxu0 0
    %288 = vmatpush1.bf16.msra.mxu0 0
    %289 = vmatprep.subr.bf16.mxu0 0
    %290 = vmatpush1.bf16.msra.mxu0 0
    %291 = vmatprep.subr.bf16.mxu0 0
    %292 = vmatpush1.bf16.msra.mxu0 0
    %293 = vmatprep.subr.bf16.mxu0 0
    %294 = vmatpush1.bf16.msra.mxu0 0
    %295 = vmatprep.subr.bf16.mxu0 0
    %296 = vmatpush1.bf16.msra.mxu0 0
    %297 = vmatprep.subr.bf16.mxu0 0
    %298 = vmatpush1.bf16.msra.mxu0 0
    %299 = vmatprep.subr.bf16.mxu0 0
    %300 = vmatpush1.bf16.msra.mxu0 0
    %301 = vmatprep.subr.bf16.mxu0 0
    %302 = vmatpush1.bf16.msra.mxu0 0
    %303 = vmatprep.subr.bf16.mxu0 0
    %304 = vmatpush1.bf16.msra.mxu0 0
    %305 = vmatprep.subr.bf16.mxu0 0
    %306 = vmatpush1.bf16.msra.mxu0 0
    %307 = vmatprep.subr.bf16.mxu0 0
    %308 = vmatpush1.bf16.msra.mxu0 0
    %309 = vmatprep.subr.bf16.mxu0 0
    %310 = vmatpush1.bf16.msra.mxu0 0
    %311 = vmatprep.mubr.bf16.mxu0 0
    %312 = vmatmul.mubr.bf16.gmra.mrb[0].mxu0 %v277
    %v313 = vpop.f32.mrb[0].mxu0
    %v314 = vadd.f32 0.0, %v313
    %v315 = vpop.f32.mrb[0].mxu0
    %v316 = vpop.f32.mrb[0].mxu0
    %v317 = vadd.f32 0.0, %v316
    %v318 = vpop.f32.mrb[0].mxu0
    %319 = vdwg.mxu0
    %v336 = vunpack.c.l.b16 %v246
    %v337 = vunpack.c.l.b16 %v247
    %v338 = vunpack.c.l.b16 %v248
    %v339 = vunpack.c.l.b16 %v249
    %v340 = vunpack.c.l.b16 %v250
    %v341 = vunpack.c.l.b16 %v251
    %v342 = vunpack.c.l.b16 %v252
    %v343 = vunpack.c.l.b16 %v253
    %v344 = vunpack.c.l.b16 %v254
    %v345 = vunpack.c.l.b16 %v255
    %v346 = vunpack.c.l.b16 %v256
    %v347 = vunpack.c.l.b16 %v257
    %v348 = vunpack.c.l.b16 %v258
    %v349 = vunpack.c.l.b16 %v259
    %v350 = vunpack.c.l.b16 %v260
    %v351 = vunpack.c.l.b16 %v261
    %v352 = vpack.c.b16 %v337, %v336
    %v353 = vpack.c.b16 %v339, %v338
    %v354 = vpack.c.b16 %v341, %v340
    %v355 = vpack.c.b16 %v343, %v342
    %v356 = vpack.c.b16 %v345, %v344
    %v357 = vpack.c.b16 %v347, %v346
    %v358 = vpack.c.b16 %v349, %v348
    %v359 = vpack.c.b16 %v351, %v350
    %368 = vmatprep.subr.bf16.mxu0 0
    %369 = vmatpush1.bf16.msra.mxu0 %v352
    %370 = vmatprep.subr.bf16.mxu0 0
    %371 = vmatpush1.bf16.msra.mxu0 %v353
    %372 = vmatprep.subr.bf16.mxu0 0
    %373 = vmatpush1.bf16.msra.mxu0 %v354
    %374 = vmatprep.subr.bf16.mxu0 0
    %375 = vmatpush1.bf16.msra.mxu0 %v355
    %376 = vmatprep.subr.bf16.mxu0 0
    %377 = vmatpush1.bf16.msra.mxu0 %v356
    %378 = vmatprep.subr.bf16.mxu0 0
    %379 = vmatpush1.bf16.msra.mxu0 %v357
    %380 = vmatprep.subr.bf16.mxu0 0
    %381 = vmatpush1.bf16.msra.mxu0 %v358
    %382 = vmatprep.subr.bf16.mxu0 0
    %383 = vmatpush1.bf16.msra.mxu0 %v359
    %384 = vmatprep.subr.bf16.mxu0 0
    %385 = vmatpush1.bf16.msra.mxu0 0
    %386 = vmatprep.subr.bf16.mxu0 0
    %387 = vmatpush1.bf16.msra.mxu0 0
    %388 = vmatprep.subr.bf16.mxu0 0
    %389 = vmatpush1.bf16.msra.mxu0 0
    %390 = vmatprep.subr.bf16.mxu0 0
    %391 = vmatpush1.bf16.msra.mxu0 0
    %392 = vmatprep.subr.bf16.mxu0 0
    %393 = vmatpush1.bf16.msra.mxu0 0
    %394 = vmatprep.subr.bf16.mxu0 0
    %395 = vmatpush1.bf16.msra.mxu0 0
    %396 = vmatprep.subr.bf16.mxu0 0
    %397 = vmatpush1.bf16.msra.mxu0 0
    %398 = vmatprep.subr.bf16.mxu0 0
    %399 = vmatpush1.bf16.msra.mxu0 0
    %400 = vmatprep.mubr.bf16.mxu0 0
    %401 = vmatmul.mubr.bf16.gmra.mrb[0].mxu0 %v245
    %v402 = vpop.f32.mrb[0].mxu0
    %v403 = vadd.f32 %v314, %v402
    %v404 = vpop.f32.mrb[0].mxu0
    %v405 = vpop.f32.mrb[0].mxu0
    %v406 = vadd.f32 %v317, %v405
    %v407 = vpop.f32.mrb[0].mxu0
    %408 = vdwg.mxu0
    %v409 = vld [vmem:[#allocation13] sm:$0x1]
    %v411 = vlaneseq
    %v412 = vshrl.u32 %v411, 7
    %v413 = vsub.s32 0, %v412
    %v414 = vrot.slane %v409, %v413
    %v416 = vadd.f32 %v403, %v414
    %v417 = vadd.f32 %v406, %v414
    %v418 = vmax.f32 %v416, 0.0
    %v419 = vmax.f32 %v417, 0.0
    %v420 = vpack.c.bf16 %v419, %v418
    %v421 = vld [vmem:[#allocation14] sm:$0xf]
    %v422 = vld [vmem:[#allocation14 + $0x4] sm:$0xf]
    %v423 = vld [vmem:[#allocation14 + $0x8] sm:$0xf]
    %v424 = vld [vmem:[#allocation14 + $0xc] sm:$0xf]
    %v425 = vld [vmem:[#allocation14 + $0x10] sm:$0xf]
    %v426 = vld [vmem:[#allocation14 + $0x14] sm:$0xf]
    %v427 = vld [vmem:[#allocation14 + $0x18] sm:$0xf]
    %v428 = vld [vmem:[#allocation14 + $0x1c] sm:$0xf]
    %v429 = vld [vmem:[#allocation14 + $0x20] sm:$0xf]
    %v430 = vld [vmem:[#allocation14 + $0x24] sm:$0xf]
    %v431 = vld [vmem:[#allocation14 + $0x28] sm:$0xf]
    %v432 = vld [vmem:[#allocation14 + $0x2c] sm:$0xf]
    %v433 = vld [vmem:[#allocation14 + $0x30] sm:$0xf]
    %v434 = vld [vmem:[#allocation14 + $0x34] sm:$0xf]
    %v435 = vld [vmem:[#allocation14 + $0x38] sm:$0xf]
    %v436 = vld [vmem:[#allocation14 + $0x3c] sm:$0xf]
    %v437 = vld [vmem:[#allocation16] sm:$0x1]
    %v439 = vlaneseq
    %v440 = vshrl.u32 %v439, 7
    %v441 = vsub.s32 0, %v440
    %v442 = vrot.slane %v437, %v441
    %v460 = vunpack.c.l.b16 %v421
    %v461 = vunpack.c.l.b16 %v422
    %v462 = vunpack.c.l.b16 %v423
    %v463 = vunpack.c.l.b16 %v424
    %v464 = vunpack.c.l.b16 %v425
    %v465 = vunpack.c.l.b16 %v426
    %v466 = vunpack.c.l.b16 %v427
    %v467 = vunpack.c.l.b16 %v428
    %v468 = vunpack.c.l.b16 %v429
    %v469 = vunpack.c.l.b16 %v430
    %v470 = vunpack.c.l.b16 %v431
    %v471 = vunpack.c.l.b16 %v432
    %v472 = vunpack.c.l.b16 %v433
    %v473 = vunpack.c.l.b16 %v434
    %v474 = vunpack.c.l.b16 %v435
    %v475 = vunpack.c.l.b16 %v436
    %v476 = vpack.c.b16 %v461, %v460
    %v477 = vpack.c.b16 %v463, %v462
    %v478 = vpack.c.b16 %v465, %v464
    %v479 = vpack.c.b16 %v467, %v466
    %v480 = vpack.c.b16 %v469, %v468
    %v481 = vpack.c.b16 %v471, %v470
    %v482 = vpack.c.b16 %v473, %v472
    %v483 = vpack.c.b16 %v475, %v474
    %492 = vmatprep.subr.bf16.mxu0 0
    %493 = vmatpush1.bf16.msra.mxu0 %v476
    %494 = vmatprep.subr.bf16.mxu0 0
    %495 = vmatpush1.bf16.msra.mxu0 %v477
    %496 = vmatprep.subr.bf16.mxu0 0
    %497 = vmatpush1.bf16.msra.mxu0 %v478
    %498 = vmatprep.subr.bf16.mxu0 0
    %499 = vmatpush1.bf16.msra.mxu0 %v479
    %500 = vmatprep.subr.bf16.mxu0 0
    %501 = vmatpush1.bf16.msra.mxu0 %v480
    %502 = vmatprep.subr.bf16.mxu0 0
    %503 = vmatpush1.bf16.msra.mxu0 %v481
    %504 = vmatprep.subr.bf16.mxu0 0
    %505 = vmatpush1.bf16.msra.mxu0 %v482
    %506 = vmatprep.subr.bf16.mxu0 0
    %507 = vmatpush1.bf16.msra.mxu0 %v483
    %508 = vmatprep.subr.bf16.mxu0 0
    %509 = vmatpush1.bf16.msra.mxu0 0
    %510 = vmatprep.subr.bf16.mxu0 0
    %511 = vmatpush1.bf16.msra.mxu0 0
    %512 = vmatprep.subr.bf16.mxu0 0
    %513 = vmatpush1.bf16.msra.mxu0 0
    %514 = vmatprep.subr.bf16.mxu0 0
    %515 = vmatpush1.bf16.msra.mxu0 0
    %516 = vmatprep.subr.bf16.mxu0 0
    %517 = vmatpush1.bf16.msra.mxu0 0
    %518 = vmatprep.subr.bf16.mxu0 0
    %519 = vmatpush1.bf16.msra.mxu0 0
    %520 = vmatprep.subr.bf16.mxu0 0
    %521 = vmatpush1.bf16.msra.mxu0 0
    %522 = vmatprep.subr.bf16.mxu0 0
    %523 = vmatpush1.bf16.msra.mxu0 0
    %524 = vmatprep.mubr.bf16.mxu0 0
    %525 = vmatmul.mubr.bf16.gmra.mrb[0].mxu0 %v420
    %v526 = vpop.f32.mrb[0].mxu0
    %v527 = vadd.f32 %v442, %v526
    %v528 = vpop.f32.mrb[0].mxu0
    %v529 = vpop.f32.mrb[0].mxu0
    %v530 = vadd.f32 %v442, %v529
    %v531 = vpop.f32.mrb[0].mxu0
    %532 = vdwg.mxu0
    %533 = vst [vmem:[#allocation17] sm:$0xff] %v527
    %534 = vst [vmem:[#allocation17 + $0x8] sm:$0xff] %v530
    // Predicated region
    $region74: #{tpu_custom_call.1} parent=1 // pred_check
      _
    $region75: #{tpu_custom_call.1} parent=1 // pred_check_branch
      %536 = sbr.rel (0) target = $region77
    $region76: #{tpu_custom_call.1} parent=1 // pred_region
      %s538 = ssub.s32 256, 256
      %539 = vsyncadd [#allocation4], %s538
      %s540 = sshll.u32 [#allocation17], 4
      %s541 = int_to_ptr.vmem [resolvable:$true] %s540
      %546 = dma.vmem_to_hbm [thread:$0]  %s541, 256, %s9, [#allocation4], 128, 128, 8
    $region77: #{tpu_custom_call.1} parent=1 // pred_fallthru
      _
    // Predicated region
    $region78: #{tpu_custom_call.1} parent=1 // pred_check
      _
    $region79: #{tpu_custom_call.1} parent=1 // pred_check_branch
      %548 = sbr.rel (0) target = $region81
    $region80: #{tpu_custom_call.1} parent=1 // pred_region
      %549 = dma.done [#allocation4], 256
    $region81: #{tpu_custom_call.1} parent=1 // pred_fallthru
      _
    %550 = vsyncpa [#allocation3], 1
    %551 = vsyncpa [#allocation6], 1
    %552 = vsyncpa [#allocation9], 1
    %553 = vsyncpa [#allocation12], 1
    %554 = vsyncpa [#allocation15], 1
    %555 = vsyncpa [#allocation4], 1

</llo_original>
